<compile_context>
chip_gen: v7x
topology: tpu7x:2x2x1
jax: 0.10.0
libtpu: 0.0.40
codegen_flags: <defaults>
</compile_context>

<pallas_src>
import jax
import jax.numpy as jnp
from jax.experimental import pallas as pl
from jax.experimental.pallas import tpu as pltpu

FASTTEXT_DIM = 300
LN_EPS = 1e-5
_DEFAULT_TILE_ROWS = 512                 # mem-bound streaming tile; sweep 256-1024
_VMEM_LIMIT_BYTES = 32 * 1024 * 1024     # <= physical VMEM on v5e/v6e/v7x
_VMEM_TILE_BUDGET = 24 * 1024 * 1024     # headroom for compiler scratch


def _round_up(x, m):
    return ((x + m - 1) // m) * m


def _pick_tile_rows(N, D, H, x_bytes, w_bytes, out_bytes, tile_rows):
    """Multiple-of-8 row tile: >=4 grid tiles (megacore) and fits VMEM budget."""
    tm = max(8, min(int(tile_rows), _round_up(pl.cdiv(N, 4), 8)))
    weight_bytes = 2 * D * H * w_bytes + 2 * H * 4   # weight + bias, 2 buffers each

    def vmem(t):  # double-buffered input tile + output tile + resident weights
        return 2 * t * (D * x_bytes + H * out_bytes) + weight_bytes

    while tm > 8 and vmem(tm) > _VMEM_TILE_BUDGET:
        tm = max(8, _round_up(tm // 2, 8))
    return tm


def _savo_kernel(x_ref, w_ref, b_ref, out_ref):
    """One row tile: LayerNorm(300) (affine pre-folded) -> Linear(300 -> H).

    x_ref  : (TM, 300) f32  fasttext embeddings (streamed row tile)
    w_ref  : (300, H)  bf16 gamma-folded linear weight (VMEM resident)
    b_ref  : (1, H)    f32  beta-folded bias + constant score-branch embed
    out_ref: (TM, H)   f32 (or requested out_dtype)
    """
    # LN statistics in f32 (v5e VPU/EUP have no bf16).
    x = x_ref[...].astype(jnp.float32)
    mean = jnp.mean(x, axis=-1, keepdims=True)
    var = jnp.mean((x - mean) ** 2, axis=-1, keepdims=True)
    xn = (x - mean) * jax.lax.rsqrt(var + LN_EPS)
    # bf16 x bf16 MXU matmul with f32 accumulate (single-pass MXU on all gens).
    acc = jnp.dot(xn.astype(jnp.bfloat16), w_ref[...],
                  preferred_element_type=jnp.float32) + b_ref[...]
    out_ref[...] = acc.astype(out_ref.dtype)


def savo_extractor(top_k_fasttext_embeddings, top_k_similarities, params,
                   *, tile_rows=_DEFAULT_TILE_ROWS, out_dtype=jnp.float32):
    """
    top_k_fasttext_embeddings : (B, K, 300) float
    top_k_similarities        : (B, K, 1)   float  (provably no effect -- see below)
    returns (top_k_fasttext_embeddings, visual_concept_embedding[B, K, H])
    """
    B, K, D = top_k_fasttext_embeddings.shape
    assert D == FASTTEXT_DIM
    H = params["w_voc"].shape[1]
    N = B * K

    # ---- constant-fold the score branch ------------------------------------
    # LayerNorm over a size-1 feature dim => (s - mean) == 0 => output == beta_sc,
    # so embed_score = beta_sc @ w_sc + b_sc is a fixed (1, H) row. Fold into bias.
    # Guard: this fold is only valid for the declared 1-wide score branch.
    assert params["w_sc"].shape[0] == 1 and params["be_sc"].shape == (1, 1)
    score_const = params["be_sc"][0, 0] * params["w_sc"] + params["b_sc"]     # (1,H)
    del top_k_similarities  # scores cannot influence the output (degenerate LN(1))

    # ---- fold the vocab LayerNorm affine into the linear ---------------------
    # Weight is pre-cast to bf16 (the one intentional quantization: MXU operands).
    w_fused = (params["w_voc"] * params["g_voc"].reshape(D, 1)).astype(jnp.bfloat16)
    b_fused = (params["be_voc"] @ params["w_voc"] + params["b_voc"]
               + score_const).astype(jnp.float32)                            # (1,H)

    # ---- flatten rows; no padding of N or H ----------------------------------
    x = top_k_fasttext_embeddings.reshape(N, D)            # native dtype, no copy
    x_bytes = x.dtype.itemsize
    w_bytes = w_fused.dtype.itemsize
    out_bytes = jnp.dtype(out_dtype).itemsize

    TM = _pick_tile_rows(N, D, H, x_bytes, w_bytes, out_bytes, tile_rows)
    grid = (pl.cdiv(N, TM),)

    cost = pl.CostEstimate(
        flops=2 * N * D * H,
        transcendentals=N,                                  # one rsqrt per row
        bytes_accessed=(N * D * x_bytes                     # input stream
                        + D * H * w_bytes + H * 4           # resident weights/bias
                        + N * H * out_bytes),               # output stream
    )

    out = pl.pallas_call(
        _savo_kernel,
        out_shape=jax.ShapeDtypeStruct((N, H), out_dtype),
        grid=grid,
        in_specs=[
            pl.BlockSpec((TM, D), lambda i: (i, 0)),        # streamed row tile
            pl.BlockSpec((D, H), lambda i: (0, 0)),         # weights: VMEM resident
            pl.BlockSpec((1, H), lambda i: (0, 0)),         # fused bias
        ],
        out_specs=pl.BlockSpec((TM, H), lambda i: (i, 0)),
        compiler_params=pltpu.CompilerParams(
            dimension_semantics=("parallel",),              # megacore shard (v7x)
            vmem_limit_bytes=_VMEM_LIMIT_BYTES),
        cost_estimate=cost,
    )(x, w_fused, b_fused)

    visual_concept_embedding = out.reshape(B, K, H)         # free view, no slice
    return top_k_fasttext_embeddings, visual_concept_embedding


def init_params(key, hidden_size):
    """Deterministic init matching nn.Linear / nn.LayerNorm default shapes."""
    k1, k2, k3, k4 = jax.random.split(key, 4)
    bound_voc = 1.0 / jnp.sqrt(FASTTEXT_DIM)
    bound_sc = 1.0
    return {
        # Linear(300 -> H): weight stored as (in, out) so kernel does x @ W
        "w_voc": jax.random.uniform(k1, (FASTTEXT_DIM, hidden_size),
                                    jnp.float32, -bound_voc, bound_voc),
        "b_voc": jax.random.uniform(k2, (1, hidden_size),
                                    jnp.float32, -bound_voc, bound_voc),
        # LayerNorm(300)
        "g_voc": jnp.ones((1, FASTTEXT_DIM), jnp.float32),
        "be_voc": jnp.zeros((1, FASTTEXT_DIM), jnp.float32),
        # Linear(1 -> H)
        "w_sc": jax.random.uniform(k3, (1, hidden_size),
                                   jnp.float32, -bound_sc, bound_sc),
        "b_sc": jax.random.uniform(k4, (1, hidden_size),
                                   jnp.float32, -bound_sc, bound_sc),
        # LayerNorm(1)
        "g_sc": jnp.ones((1, 1), jnp.float32),
        "be_sc": jnp.zeros((1, 1), jnp.float32),
    }


def _reference(emb, scores, p):
    """Full (un-folded) f32 pre-norm reference, incl. the degenerate score branch."""
    x = emb.reshape(-1, FASTTEXT_DIM)
    s = scores.reshape(-1, 1)
    xm = x.mean(-1, keepdims=True)
    xv = ((x - xm) ** 2).mean(-1, keepdims=True)
    xn = (x - xm) / jnp.sqrt(xv + LN_EPS) * p["g_voc"] + p["be_voc"]
    ev = xn @ p["w_voc"] + p["b_voc"]
    smn = s.mean(-1, keepdims=True)
    svv = ((s - smn) ** 2).mean(-1, keepdims=True)
    sn = (s - smn) / jnp.sqrt(svv + LN_EPS) * p["g_sc"] + p["be_sc"]
    es = sn @ p["w_sc"] + p["b_sc"]
    return (ev + es).reshape(emb.shape[0], emb.shape[1], -1)


if __name__ == "__main__":
    B, K, H = 2, 8, 32            # batch, top_k objects, hidden_size
    key = jax.random.PRNGKey(0)
    kp, ke, ks = jax.random.split(key, 3)

    params = init_params(kp, H)
    # stand-ins for fasttext embeddings of top-K objects and CLIP softmax scores
    top_k_fasttext = jax.random.normal(ke, (B, K, FASTTEXT_DIM), jnp.float32)
    top_k_scores = jax.nn.softmax(
        jax.random.normal(ks, (B, K), jnp.float32), axis=-1)[..., None]  # (B,K,1)

    emb_out, vce = savo_extractor(top_k_fasttext, top_k_scores, params)
    vce = jax.block_until_ready(vce)

    # f32 reference; tolerance covers the intentional bf16 MXU-operand quantization.
    ref = _reference(top_k_fasttext, top_k_scores, params)

    assert vce.shape == (B, K, H)
    max_err = float(jnp.max(jnp.abs(vce - ref)))
    assert jnp.allclose(vce, ref, atol=2e-2, rtol=2e-2), max_err
    print("KERNEL_OK")
</pallas_src>

<mosaic_0001>
module attributes {stable_mosaic.version = 11 : i64} {
  func.func @_savo_kernel(%arg0: i32, %arg1: memref<8x300xf32, #tpu.memory_space<vmem>>, %arg2: memref<300x32xbf16, #tpu.memory_space<vmem>>, %arg3: memref<1x32xf32, #tpu.memory_space<vmem>>, %arg4: memref<8x32xf32, #tpu.memory_space<vmem>>) attributes {dimension_semantics = [#tpu.dimension_semantics<parallel>], iteration_bounds = array<i64: 2>, scalar_prefetch = 0 : i64, scratch_operands = 0 : i64, tpu.core_type = #tpu.core_type<tc>, window_params = [{transform_indices = @transform_0, window_bounds = array<i64: 8, 300>}, {pipeline_mode = #tpu.pipeline_mode<synchronous>, transform_indices = @transform_1, window_bounds = array<i64: 300, 32>}, {pipeline_mode = #tpu.pipeline_mode<synchronous>, transform_indices = @transform_2, window_bounds = array<i64: 1, 32>}, {transform_indices = @transform_3, window_bounds = array<i64: 8, 32>}]} {
    %c0 = arith.constant 0 : index
    %c0_0 = arith.constant 0 : index
    %0 = vector.load %arg1[%c0, %c0_0] : memref<8x300xf32, #tpu.memory_space<vmem>>, vector<8x300xf32>
    %cst = arith.constant dense<0.000000e+00> : vector<8xf32>
    %1 = vector.multi_reduction <add>, %0, %cst [1] : vector<8x300xf32> to vector<8xf32>
    %2 = vector.shape_cast %1 : vector<8xf32> to vector<8x1xf32>
    %cst_1 = arith.constant 3.000000e+02 : f32
    %3 = vector.broadcast %cst_1 : f32 to vector<8x1xf32>
    %4 = arith.divf %2, %3 : vector<8x1xf32>
    %5 = vector.broadcast %4 : vector<8x1xf32> to vector<8x300xf32>
    %6 = arith.subf %0, %5 : vector<8x300xf32>
    %7 = arith.mulf %6, %6 : vector<8x300xf32>
    %cst_2 = arith.constant dense<0.000000e+00> : vector<8xf32>
    %8 = vector.multi_reduction <add>, %7, %cst_2 [1] : vector<8x300xf32> to vector<8xf32>
    %9 = vector.shape_cast %8 : vector<8xf32> to vector<8x1xf32>
    %cst_3 = arith.constant 3.000000e+02 : f32
    %10 = vector.broadcast %cst_3 : f32 to vector<8x1xf32>
    %11 = arith.divf %9, %10 : vector<8x1xf32>
    %12 = vector.broadcast %4 : vector<8x1xf32> to vector<8x300xf32>
    %13 = arith.subf %0, %12 : vector<8x300xf32>
    %cst_4 = arith.constant 9.99999974E-6 : f32
    %14 = vector.broadcast %cst_4 : f32 to vector<8x1xf32>
    %15 = arith.addf %11, %14 : vector<8x1xf32>
    %16 = math.rsqrt %15 : vector<8x1xf32>
    %17 = vector.broadcast %16 : vector<8x1xf32> to vector<8x300xf32>
    %18 = arith.mulf %13, %17 : vector<8x300xf32>
    %19 = arith.truncf %18 : vector<8x300xf32> to vector<8x300xbf16>
    %c0_5 = arith.constant 0 : index
    %c0_6 = arith.constant 0 : index
    %20 = vector.load %arg2[%c0_5, %c0_6] : memref<300x32xbf16, #tpu.memory_space<vmem>>, vector<300x32xbf16>
    %cst_7 = arith.constant dense<0.000000e+00> : vector<8x32xf32>
    %21 = tpu.matmul %19, %20, %cst_7 {dimension_numbers = #tpu.dot_dimension_numbers<[1], [0], [0], [1], [0, 0, 1, 1], [], []>} : vector<8x300xbf16>, vector<300x32xbf16>, vector<8x32xf32> -> vector<8x32xf32>
    %c0_8 = arith.constant 0 : index
    %c0_9 = arith.constant 0 : index
    %22 = vector.load %arg3[%c0_8, %c0_9] : memref<1x32xf32, #tpu.memory_space<vmem>>, vector<1x32xf32>
    %23 = vector.broadcast %22 : vector<1x32xf32> to vector<8x32xf32>
    %24 = arith.addf %21, %23 : vector<8x32xf32>
    %c0_10 = arith.constant 0 : index
    %c0_11 = arith.constant 0 : index
    %25 = vector.load %arg4[%c0_10, %c0_11] : memref<8x32xf32, #tpu.memory_space<vmem>>, vector<8x32xf32>
    tpu.vector_store %arg4[%c0_10, %c0_11], %24 {strides = array<i32>} : memref<8x32xf32, #tpu.memory_space<vmem>>, vector<8x32xf32>,
    return
  }
  func.func @transform_0(%arg0: i32) -> (i32, i32) {
    %c0_i32 = arith.constant 0 : i32
    %c0_i32_0 = arith.constant 0 : i32
    return %arg0, %c0_i32 : i32, i32
  }
  func.func @transform_1(%arg0: i32) -> (i32, i32) {
    %c0_i32 = arith.constant 0 : i32
    %c0_i32_0 = arith.constant 0 : i32
    %c0_i32_1 = arith.constant 0 : i32
    return %c0_i32, %c0_i32_0 : i32, i32
  }
  func.func @transform_2(%arg0: i32) -> (i32, i32) {
    %c0_i32 = arith.constant 0 : i32
    %c0_i32_0 = arith.constant 0 : i32
    %c0_i32_1 = arith.constant 0 : i32
    return %c0_i32, %c0_i32_0 : i32, i32
  }
  func.func @transform_3(%arg0: i32) -> (i32, i32) {
    %c0_i32 = arith.constant 0 : i32
    %c0_i32_0 = arith.constant 0 : i32
    return %arg0, %c0_i32 : i32, i32
  }
}

</mosaic_0001>

<llo_original>
// kernel: tpu_custom_call.1
$region0: #{tpu_custom_call.1}
  #allocation0 [shape = 'u32[]', space=smem, size = 0x4, offset = 0x4, fixed_abs, tag = 'smem constant byte address 0x4 - core index']
  #allocation1 [shape = 'u32[144,128]{1,0:T(1,128)}', space=vmem, size = 0x12000, scoped, tag = 'internal scratch']
  %s0 = inlined_call_operand.vmem [shape: f32[16,300], index: 0, kind: input, shape index: {}]
  %s1 = inlined_call_operand.vmem [shape: bf16[300,32], index: 1, kind: input, shape index: {}]
  %s2 = inlined_call_operand.vmem [shape: f32[1,32], index: 2, kind: input, shape index: {}]
  %s3 = inlined_call_operand.hbm [shape: f32[16,32], index: 3, kind: output, shape index: {}]
  %s4 = sld [smem:[#allocation0]]
  $region45: #{tpu_custom_call.1} parent=0
    _
  %s6 = ssub.s32 1, %s4
  %s7 = scalar_select 0, %s6, %s4
  $region1: #{tpu_custom_call.1} parent=0
    #allocation2 [shape = 'u8[8192]{0}', space=vmem, size = 0x2000, scoped, tag = 'output window, operand 0']
    #allocation3 [shape = 's32[2]{0}', space=sflag, size = 0x8, scoped, tag = 'scoped memory for tpu_custom_call.1']
    %8 = vsyncpa [#allocation3], 0
    %s9 = scalar_lea.sflag [#allocation3], 1
    %10 = vsyncpa %s9, 0
    loop: start=0, step=1, limit=4
    $region2: #{tpu_custom_call.1} parent=1 // loop_pre_header
      _
    $region3: #{tpu_custom_call.1} parent=1 // loop_header
      %s12 = sphi 0, %s16
      %p13 = scmp.ge.s32.totalorder %s12, 4
      %s22 = sphi 0, %s24
      %s25 = sphi 0, %s22
      %s26 = sphi 0, %s25
      %s42 = sphi 0, %s26
      %s46 = sphi 0, %s46
      %s48 = sphi 0, %s46
      %s49 = sphi 0, %s48
      %s63 = sphi 0, %s49
      %s67 = sphi 0, %s67
      %s69 = sphi 0, %s67
      %s70 = sphi 0, %s69
      %s84 = sphi 0, %s70
      %s90 = sphi 0, %s92
      %s93 = sphi 0, %s90
      %s94 = sphi 0, %s93
      %s110 = sphi 0, %s94
    $region4: #{tpu_custom_call.1} parent=1 // loop_header_branch
      %15 = sbr.rel (%p13) target = $region8
    $region5: #{tpu_custom_call.1} parent=1 // loop_body
      %s17 = ssub.s32 %s12, 1
      %s18 = ssub.s32 %s12, 2
      %s19 = sadd.s32 %s12, 1
      %s20 = ssub.s32 %s12, %s19
      %p21 = scmp.eq.s32.totalorder %s20, 0
      %s23 = sadd.s32 %s22, 1
      %s24 = scalar_select %p21, %s22, %s23
      %p27 = pneg %p21
      %p28 = scmp.eq.s32.totalorder %s12, 1
      %p29 = por %p27, %p28
      %p30 = scmp.ne.s32.totalorder %s22, %s25
      %p31 = scmp.eq.s32.totalorder %s12, 0
      %p32 = por %p30, %p31
      %p33 = scmp.ne.s32.totalorder %s22, %s25
      %p34 = scmp.eq.s32.totalorder %s17, 1
      %p35 = por %p33, %p34
      %p36 = scmp.ne.s32.totalorder %s25, %s26
      %p37 = scmp.eq.s32.totalorder %s17, 0
      %p38 = por %p36, %p37
      %p39 = scmp.ne.s32.totalorder %s25, %s26
      %p40 = scmp.eq.s32.totalorder %s18, 1
      %p41 = por %p39, %p40
      %p43 = scmp.ne.s32.totalorder %s26, %s42
      %p44 = scmp.eq.s32.totalorder %s18, 0
      %p45 = por %p43, %p44
      %s47 = sadd.s32 %s46, 1
      %p50 = scmp.eq.s32.totalorder %s12, 1
      %p51 = scmp.ne.s32.totalorder %s46, %s48
      %p52 = scmp.eq.s32.totalorder %s12, 0
      %p53 = por %p51, %p52
      %p54 = scmp.ne.s32.totalorder %s46, %s48
      %p55 = scmp.eq.s32.totalorder %s17, 1
      %p56 = por %p54, %p55
      %p57 = scmp.ne.s32.totalorder %s48, %s49
      %p58 = scmp.eq.s32.totalorder %s17, 0
      %p59 = por %p57, %p58
      %p60 = scmp.ne.s32.totalorder %s48, %s49
      %p61 = scmp.eq.s32.totalorder %s18, 1
      %p62 = por %p60, %p61
      %p64 = scmp.ne.s32.totalorder %s49, %s63
      %p65 = scmp.eq.s32.totalorder %s18, 0
      %p66 = por %p64, %p65
      %s68 = sadd.s32 %s67, 1
      %p71 = scmp.eq.s32.totalorder %s12, 1
      %p72 = scmp.ne.s32.totalorder %s67, %s69
      %p73 = scmp.eq.s32.totalorder %s12, 0
      %p74 = por %p72, %p73
      %p75 = scmp.ne.s32.totalorder %s67, %s69
      %p76 = scmp.eq.s32.totalorder %s17, 1
      %p77 = por %p75, %p76
      %p78 = scmp.ne.s32.totalorder %s69, %s70
      %p79 = scmp.eq.s32.totalorder %s17, 0
      %p80 = por %p78, %p79
      %p81 = scmp.ne.s32.totalorder %s69, %s70
      %p82 = scmp.eq.s32.totalorder %s18, 1
      %p83 = por %p81, %p82
      %p85 = scmp.ne.s32.totalorder %s70, %s84
      %p86 = scmp.eq.s32.totalorder %s18, 0
      %p87 = por %p85, %p86
      %s88 = ssub.s32 %s12, %s19
      %p89 = scmp.eq.s32.totalorder %s88, 0
      %s91 = sadd.s32 %s90, 1
      %s92 = scalar_select %p89, %s90, %s91
      %p95 = pneg %p89
      %p96 = scmp.eq.s32.totalorder %s12, 1
      %p97 = por %p95, %p96
      %p98 = scmp.ne.s32.totalorder %s90, %s93
      %p99 = scmp.eq.s32.totalorder %s12, 0
      %p100 = por %p98, %p99
      %p101 = scmp.ne.s32.totalorder %s90, %s93
      %p102 = scmp.eq.s32.totalorder %s17, 1
      %p103 = por %p101, %p102
      %p104 = scmp.ne.s32.totalorder %s93, %s94
      %p105 = scmp.eq.s32.totalorder %s17, 0
      %p106 = por %p104, %p105
      %p107 = scmp.ne.s32.totalorder %s93, %s94
      %p108 = scmp.eq.s32.totalorder %s18, 1
      %p109 = por %p107, %p108
      %p111 = scmp.ne.s32.totalorder %s94, %s110
      %p112 = scmp.eq.s32.totalorder %s18, 0
      %p113 = por %p111, %p112
      %p114 = scmp.le.s32.totalorder 1, %s12
      %p115 = scmp.lt.s32.totalorder %s12, 3
      %p116 = pnand %p114, %p115
      %p117 = pneg %p116
      // Predicated region
      $region9: #{tpu_custom_call.1} parent=5 // pred_check
        _
      $region10: #{tpu_custom_call.1} parent=5 // pred_check_branch
        %119 = sbr.rel (%p116) target = $region12
      $region11: #{tpu_custom_call.1} parent=5 // pred_region
        %s120 = ssub.s32 %s12, 1
        // Predicated region
        $region13: #{tpu_custom_call.1} parent=11 // pred_check
          %p121 = pneg %p59
        $region14: #{tpu_custom_call.1} parent=11 // pred_check_branch
          %123 = sbr.rel (%p121) target = $region16
        $region15: #{tpu_custom_call.1} parent=11 // pred_region
          _
        $region16: #{tpu_custom_call.1} parent=11 // pred_fallthru
          _
        // Predicated region
        $region17: #{tpu_custom_call.1} parent=11 // pred_check
          %p124 = pneg %p80
        $region18: #{tpu_custom_call.1} parent=11 // pred_check_branch
          %126 = sbr.rel (%p124) target = $region20
        $region19: #{tpu_custom_call.1} parent=11 // pred_region
          _
        $region20: #{tpu_custom_call.1} parent=11 // pred_fallthru
          _
      $region12: #{tpu_custom_call.1} parent=5 // pred_fallthru
        _
      %p127 = scmp.lt.s32.totalorder %s12, 2
      // Predicated region
      $region21: #{tpu_custom_call.1} parent=5 // pred_check
        %p128 = pneg %p127
      $region22: #{tpu_custom_call.1} parent=5 // pred_check_branch
        %130 = sbr.rel (%p128) target = $region24
      $region23: #{tpu_custom_call.1} parent=5 // pred_region
        // Predicated region
        $region25: #{tpu_custom_call.1} parent=23 // pred_check
          %p131 = pneg %p32
        $region26: #{tpu_custom_call.1} parent=23 // pred_check_branch
          %133 = sbr.rel (%p131) target = $region28
        $region27: #{tpu_custom_call.1} parent=23 // pred_region
          %p134 = scmp.lt.s32.totalorder %s12, 1
          %s135 = scalar_select %p134, %s12, 1
          %s136 = smul.addr %s135, 3
          %s137 = smul.addr %s136, 8
          %s138 = scalar_lea.vmem %s0, %s137
        $region28: #{tpu_custom_call.1} parent=23 // pred_fallthru
          _
      $region24: #{tpu_custom_call.1} parent=5 // pred_fallthru
        _
      %p139 = scmp.le.s32.totalorder 1, %s12
      %p140 = scmp.lt.s32.totalorder %s12, 3
      %p141 = pnand %p139, %p140
      %p142 = pneg %p141
      // Predicated region
      $region29: #{tpu_custom_call.1} parent=5 // pred_check
        _
      $region30: #{tpu_custom_call.1} parent=5 // pred_check_branch
        %144 = sbr.rel (%p141) target = $region32
      $region31: #{tpu_custom_call.1} parent=5 // pred_region
        %s145 = ssub.s32 %s12, 1
        %p146 = scmp.lt.s32.totalorder %s17, 1
        %s147 = scalar_select %p146, %s17, 1
        %s148 = smul.addr %s147, 3
        %s149 = smul.addr %s148, 8
        %s150 = scalar_lea.vmem %s0, %s149
        %p151 = pneg %p38
        %p152 = pneg %p35
        %p153 = pneg %p59
        %p154 = pneg %p56
        %p155 = pneg %p80
        %p156 = pneg %p77
        %p157 = pneg %p106
        %p158 = pneg %p103
        %s159 = sand.u32 %s93, 1
        %s160 = scalar_lea.sflag [#allocation3], %s159
        %s161 = sand.u32 %s93, 1
        %s162 = smul.addr %s161, 8
        %s163 = scalar_lea.vmem [#allocation2], %s162
        %p164 = scmp.lt.s32.totalorder %s17, 1
        %s165 = scalar_select %p164, %s17, 1
        %s166 = smul.addr %s165, 3
        %s167 = smul.addr %s166, 8
        %s168 = scalar_lea.vmem %s0, %s167
        %v170 = vld [vmem:[%s168] sm:$0xff]
        %v171 = vld [vmem:[%s168 + $0x8] sm:$0xff]
        %v172 = vld [vmem:[%s168 + $0x10] sm:$0xff]
        %v173 = vadd.f32 %v170, %v171
        %vm174 = vcmask 359424
        %v175 = vsel %vm174, %v172, 0.0
        %v176 = vadd.f32 %v173, %v175
        %177 = vadd.xlane.f32.xlu0 %v176
        %v178 = vpop.xlane.xlu0 %177
        %v179 = vrcp.pop 300.0
        %v180 = vmul.f32 %v178, %v179
        %v181 = vsub.f32 %v170, %v180
        %v182 = vsub.f32 %v171, %v180
        %v183 = vsub.f32 %v172, %v180
        %v184 = vmul.f32 %v181, %v181
        %v185 = vmul.f32 %v182, %v182
        %v186 = vmul.f32 %v183, %v183
        %v187 = vadd.f32 %v184, %v185
        %v188 = vsel %vm174, %v186, 0.0
        %v189 = vadd.f32 %v187, %v188
        %190 = vadd.xlane.f32.xlu0 %v189
        %v191 = vpop.xlane.xlu0 %190
        %v192 = vmul.f32 %v191, %v179
        %v193 = vadd.f32 %v192, 1e-05
        %v194 = vrsqrt.pop %v193
        %v195 = vmul.f32 %v181, %v194
        %v196 = vmul.f32 %v182, %v194
        %v197 = vmul.f32 %v183, %v194
        %v198 = vpack.c.bf16 %v195, %v195
        %v199 = vpack.c.bf16 %v196, %v196
        %v200 = vpack.c.bf16 %v197, %v197
        %v201 = vld [vmem:[%s1] sm:$0xf]
        %v202 = vld [vmem:[%s1 + $0x4] sm:$0xf]
        %v203 = vld [vmem:[%s1 + $0x8] sm:$0xf]
        %v204 = vld [vmem:[%s1 + $0xc] sm:$0xf]
        %v205 = vld [vmem:[%s1 + $0x10] sm:$0xf]
        %v206 = vld [vmem:[%s1 + $0x14] sm:$0xf]
        %v207 = vld [vmem:[%s1 + $0x18] sm:$0xf]
        %v208 = vld [vmem:[%s1 + $0x1c] sm:$0xf]
        %v209 = vld [vmem:[%s1 + $0x20] sm:$0xf]
        %v210 = vld [vmem:[%s1 + $0x24] sm:$0xf]
        %v211 = vld [vmem:[%s1 + $0x28] sm:$0xf]
        %v212 = vld [vmem:[%s1 + $0x2c] sm:$0xf]
        %v213 = vld [vmem:[%s1 + $0x30] sm:$0xf]
        %v214 = vld [vmem:[%s1 + $0x34] sm:$0xf]
        %v215 = vld [vmem:[%s1 + $0x38] sm:$0xf]
        %v216 = vld [vmem:[%s1 + $0x3c] sm:$0xf]
        %v217 = vld [vmem:[%s1 + $0x40] sm:$0xf]
        %v218 = vld [vmem:[%s1 + $0x44] sm:$0xf]
        %v219 = vld [vmem:[%s1 + $0x48] sm:$0xf]
        %v220 = vld [vmem:[%s1 + $0x4c] sm:$0xf]
        %v221 = vld [vmem:[%s1 + $0x50] sm:$0xf]
        %v222 = vld [vmem:[%s1 + $0x54] sm:$0xf]
        %v223 = vld [vmem:[%s1 + $0x58] sm:$0xf]
        %v224 = vld [vmem:[%s1 + $0x5c] sm:$0xf]
        %v225 = vld [vmem:[%s1 + $0x60] sm:$0xf]
        %v226 = vld [vmem:[%s1 + $0x64] sm:$0xf]
        %v227 = vld [vmem:[%s1 + $0x68] sm:$0xf]
        %v228 = vld [vmem:[%s1 + $0x6c] sm:$0xf]
        %v229 = vld [vmem:[%s1 + $0x70] sm:$0xf]
        %v230 = vld [vmem:[%s1 + $0x74] sm:$0xf]
        %v231 = vld [vmem:[%s1 + $0x78] sm:$0xf]
        %v232 = vld [vmem:[%s1 + $0x7c] sm:$0xf]
        %v233 = vld [vmem:[%s1 + $0x80] sm:$0xf]
        %v234 = vld [vmem:[%s1 + $0x84] sm:$0xf]
        %v235 = vld [vmem:[%s1 + $0x88] sm:$0xf]
        %v236 = vld [vmem:[%s1 + $0x8c] sm:$0xf]
        %v237 = vld [vmem:[%s1 + $0x90] sm:$0xf]
        %v238 = vld [vmem:[%s1 + $0x94] sm:$0x3]
        %v239 = vld [vmem:[%s2] sm:$0x1]
        %v241 = vlaneseq
        %v242 = vshrl.u32 %v241, 7
        %v243 = vsub.s32 0, %v242
        %v244 = vrot.slane %v239, %v243
        %v284 = vunpack.c.l.b16 %v201
        %v285 = vunpack.c.l.b16 %v202
        %v286 = vunpack.c.l.b16 %v203
        %v287 = vunpack.c.l.b16 %v204
        %v288 = vunpack.c.l.b16 %v205
        %v289 = vunpack.c.l.b16 %v206
        %v290 = vunpack.c.l.b16 %v207
        %v291 = vunpack.c.l.b16 %v208
        %v292 = vunpack.c.l.b16 %v209
        %v293 = vunpack.c.l.b16 %v210
        %v294 = vunpack.c.l.b16 %v211
        %v295 = vunpack.c.l.b16 %v212
        %v296 = vunpack.c.l.b16 %v213
        %v297 = vunpack.c.l.b16 %v214
        %v298 = vunpack.c.l.b16 %v215
        %v299 = vunpack.c.l.b16 %v216
        %v300 = vunpack.c.l.b16 %v217
        %v301 = vunpack.c.l.b16 %v218
        %v302 = vunpack.c.l.b16 %v219
        %v303 = vunpack.c.l.b16 %v220
        %v304 = vunpack.c.l.b16 %v221
        %v305 = vunpack.c.l.b16 %v222
        %v306 = vunpack.c.l.b16 %v223
        %v307 = vunpack.c.l.b16 %v224
        %v308 = vunpack.c.l.b16 %v225
        %v309 = vunpack.c.l.b16 %v226
        %v310 = vunpack.c.l.b16 %v227
        %v311 = vunpack.c.l.b16 %v228
        %v312 = vunpack.c.l.b16 %v229
        %v313 = vunpack.c.l.b16 %v230
        %v314 = vunpack.c.l.b16 %v231
        %v315 = vunpack.c.l.b16 %v232
        %v316 = vunpack.c.l.b16 %v233
        %v317 = vunpack.c.l.b16 %v234
        %v318 = vunpack.c.l.b16 %v235
        %v319 = vunpack.c.l.b16 %v236
        %v320 = vunpack.c.l.b16 %v237
        %v321 = vunpack.c.l.b16 %v238
        %v322 = vpack.c.b16 %v285, %v284
        %v323 = vpack.c.b16 %v287, %v286
        %v324 = vpack.c.b16 %v289, %v288
        %v325 = vpack.c.b16 %v291, %v290
        %v326 = vpack.c.b16 %v293, %v292
        %v327 = vpack.c.b16 %v295, %v294
        %v328 = vpack.c.b16 %v297, %v296
        %v329 = vpack.c.b16 %v299, %v298
        %v330 = vpack.c.b16 %v301, %v300
        %v331 = vpack.c.b16 %v303, %v302
        %v332 = vpack.c.b16 %v305, %v304
        %v333 = vpack.c.b16 %v307, %v306
        %v334 = vpack.c.b16 %v309, %v308
        %v335 = vpack.c.b16 %v311, %v310
        %v336 = vpack.c.b16 %v313, %v312
        %v337 = vpack.c.b16 %v315, %v314
        %v338 = vpack.c.b16 %v317, %v316
        %v339 = vpack.c.b16 %v319, %v318
        %v340 = vpack.c.b16 %v321, %v320
        %v360 = vsel %vm174, %v200, 0
        %vm362 = vcmask 1045504
        %v364 = vsel %vm362, %v340, 0
        %366 = vmatprep.subr.bf16.mxu0 0
        %367 = vmatpush1.bf16.msra.mxu0 %v322
        %368 = vmatprep.subr.bf16.mxu0 0
        %369 = vmatpush1.bf16.msra.mxu0 %v323
        %370 = vmatprep.subr.bf16.mxu0 0
        %371 = vmatpush1.bf16.msra.mxu0 %v324
        %372 = vmatprep.subr.bf16.mxu0 0
        %373 = vmatpush1.bf16.msra.mxu0 %v325
        %374 = vmatprep.subr.bf16.mxu0 0
        %375 = vmatpush1.bf16.msra.mxu0 %v326
        %376 = vmatprep.subr.bf16.mxu0 0
        %377 = vmatpush1.bf16.msra.mxu0 %v327
        %378 = vmatprep.subr.bf16.mxu0 0
        %379 = vmatpush1.bf16.msra.mxu0 %v328
        %380 = vmatprep.subr.bf16.mxu0 0
        %381 = vmatpush1.bf16.msra.mxu0 %v329
        %382 = vmatprep.subr.bf16.mxu0 0
        %383 = vmatpush1.bf16.msra.mxu0 %v330
        %384 = vmatprep.subr.bf16.mxu0 0
        %385 = vmatpush1.bf16.msra.mxu0 %v331
        %386 = vmatprep.subr.bf16.mxu0 0
        %387 = vmatpush1.bf16.msra.mxu0 %v332
        %388 = vmatprep.subr.bf16.mxu0 0
        %389 = vmatpush1.bf16.msra.mxu0 %v333
        %390 = vmatprep.subr.bf16.mxu0 0
        %391 = vmatpush1.bf16.msra.mxu0 %v334
        %392 = vmatprep.subr.bf16.mxu0 0
        %393 = vmatpush1.bf16.msra.mxu0 %v335
        %394 = vmatprep.subr.bf16.mxu0 0
        %395 = vmatpush1.bf16.msra.mxu0 %v336
        %396 = vmatprep.subr.bf16.mxu0 0
        %397 = vmatpush1.bf16.msra.mxu0 %v337
        %398 = vmatprep.mubr.bf16.mxu0 %v199
        %399 = vmatmul.mubr.bf16.gmra.mrb[0].mxu0 %v198
        %v400 = vpop.f32.mrb[0].mxu0
        %v401 = vadd.f32 %v244, %v400
        %v402 = vpop.f32.mrb[0].mxu0
        %v403 = vpop.f32.mrb[0].mxu0
        %v404 = vpop.f32.mrb[0].mxu0
        %405 = vdwg.mxu0
        %406 = vmatprep.subr.bf16.mxu0 0
        %407 = vmatpush1.bf16.msra.mxu0 %v338
        %408 = vmatprep.subr.bf16.mxu0 0
        %409 = vmatpush1.bf16.msra.mxu0 %v339
        %410 = vmatprep.subr.bf16.mxu0 0
        %411 = vmatpush1.bf16.msra.mxu0 %v364
        %412 = vmatprep.subr.bf16.mxu0 0
        %413 = vmatpush1.bf16.msra.mxu0 0
        %414 = vmatprep.subr.bf16.mxu0 0
        %415 = vmatpush1.bf16.msra.mxu0 0
        %416 = vmatprep.subr.bf16.mxu0 0
        %417 = vmatpush1.bf16.msra.mxu0 0
        %418 = vmatprep.subr.bf16.mxu0 0
        %419 = vmatpush1.bf16.msra.mxu0 0
        %420 = vmatprep.subr.bf16.mxu0 0
        %421 = vmatpush1.bf16.msra.mxu0 0
        %422 = vmatprep.subr.bf16.mxu0 0
        %423 = vmatpush1.bf16.msra.mxu0 0
        %424 = vmatprep.subr.bf16.mxu0 0
        %425 = vmatpush1.bf16.msra.mxu0 0
        %426 = vmatprep.subr.bf16.mxu0 0
        %427 = vmatpush1.bf16.msra.mxu0 0
        %428 = vmatprep.subr.bf16.mxu0 0
        %429 = vmatpush1.bf16.msra.mxu0 0
        %430 = vmatprep.subr.bf16.mxu0 0
        %431 = vmatpush1.bf16.msra.mxu0 0
        %432 = vmatprep.subr.bf16.mxu0 0
        %433 = vmatpush1.bf16.msra.mxu0 0
        %434 = vmatprep.subr.bf16.mxu0 0
        %435 = vmatpush1.bf16.msra.mxu0 0
        %436 = vmatprep.subr.bf16.mxu0 0
        %437 = vmatpush1.bf16.msra.mxu0 0
        %438 = vmatprep.mubr.bf16.mxu0 0
        %439 = vmatmul.mubr.bf16.gmra.mrb[0].mxu0 %v360
        %v440 = vpop.f32.mrb[0].mxu0
        %v441 = vadd.f32 %v401, %v440
        %v442 = vpop.f32.mrb[0].mxu0
        %v443 = vpop.f32.mrb[0].mxu0
        %v444 = vpop.f32.mrb[0].mxu0
        %445 = vdwg.mxu0
        %vm446 = vcmask 261120
        %447 = vst.msk [vmem:[%s163] sm:$0xff] %vm446, %v441
        %s448 = sand.u32 %s93, 1
        %s449 = scalar_lea.sflag [#allocation3], %s448
        %s450 = sand.u32 %s93, 1
        %s451 = smul.addr %s450, 8
        %s452 = scalar_lea.vmem [#allocation2], %s451
        // Predicated region
        $region33: #{tpu_custom_call.1} parent=31 // pred_check
          %p453 = pneg %p103
        $region34: #{tpu_custom_call.1} parent=31 // pred_check_branch
          %455 = sbr.rel (%p453) target = $region36
        $region35: #{tpu_custom_call.1} parent=31 // pred_region
          %s457 = ssub.s32 128, 128
          %458 = vsyncadd %s449, %s457
          %s459 = smul.addr %s17, 128
          %s460 = scalar_lea.hbm %s3, %s459
          %s462 = sshll.u32 %s452, 4
          %s463 = int_to_ptr.vmem [resolvable:$true] %s462
          %465 = dma.vmem_to_hbm [thread:$0]  %s463, 128, %s460, %s449
        $region36: #{tpu_custom_call.1} parent=31 // pred_fallthru
          _
      $region32: #{tpu_custom_call.1} parent=5 // pred_fallthru
        _
      %p466 = scmp.le.s32.totalorder 2, %s12
      // Predicated region
      $region37: #{tpu_custom_call.1} parent=5 // pred_check
        %p467 = pneg %p466
      $region38: #{tpu_custom_call.1} parent=5 // pred_check_branch
        %469 = sbr.rel (%p467) target = $region40
      $region39: #{tpu_custom_call.1} parent=5 // pred_region
        %s470 = ssub.s32 %s12, 2
        // Predicated region
        $region41: #{tpu_custom_call.1} parent=39 // pred_check
          %p471 = pneg %p109
        $region42: #{tpu_custom_call.1} parent=39 // pred_check_branch
          %473 = sbr.rel (%p471) target = $region44
        $region43: #{tpu_custom_call.1} parent=39 // pred_region
          %s474 = sand.u32 %s94, 1
          %s475 = scalar_lea.sflag [#allocation3], %s474
          %s476 = sand.u32 %s94, 1
          %s477 = smul.addr %s476, 8
          %s478 = scalar_lea.vmem [#allocation2], %s477
          %479 = dma.done %s475, 128
        $region44: #{tpu_custom_call.1} parent=39 // pred_fallthru
          _
      $region40: #{tpu_custom_call.1} parent=5 // pred_fallthru
        _
    $region6: #{tpu_custom_call.1} parent=1 // loop_footer
      %s16 = sadd.s32 1, %s12
    $region7: #{tpu_custom_call.1} parent=1 // loop_footer_branch
      %11 = sbr.rel target = $region3
    $region8: #{tpu_custom_call.1} parent=1 // loop_exit
      _
    %480 = vsyncpa [#allocation3], 1
    %s481 = scalar_lea.sflag [#allocation3], 1
    %482 = vsyncpa %s481, 1

</llo_original>
